<compile_context>
chip_gen: v6e
topology: v6e:2x2x1
jax: 0.10.0
libtpu: 0.0.40
codegen_flags: <defaults>
</compile_context>

<pallas_src>
import math

import jax
import jax.numpy as jnp
from jax.experimental import pallas as pl
from jax.experimental.pallas import tpu as pltpu


# ------------------------------ kernel -------------------------------------- #

def mlp_noise_fused_kernel(t_ref, x_ref, pe_hbm, wconv_ref, bconv_ref,
                           w1_ref, b1_ref, w2_ref, b2_ref, w3_ref, b3_ref,
                           out_ref, emb_ref, sem):
    """Fused forward: conv (as one matmul) -> mlp1 -> +emb -> mlp2.

    t_ref     : (B,) int32 SMEM        per-sample diffusion timestep
    x_ref     : (B, L*D) VMEM          input flattened L-major / D-minor
    pe_hbm    : (T, H)   HBM (ANY)     sinusoidal time-embedding table
    wconv_ref : (L*D, L*D) VMEM        Conv1d folded into block-tridiagonal matrix
    bconv_ref : (1, L*D) VMEM          conv bias tiled over positions
    w1,b1     : (L*D, H), (1, H)       mlp1 Linear
    w2,b2     : (H, H),   (1, H)       mlp2[0] Linear
    w3,b3     : (H, L*D), (1, L*D)     mlp2[2] Linear
    out_ref   : (B, L*D) VMEM
    emb_ref   : (B, H) VMEM scratch    gathered embedding rows
    sem       : (B,) DMA semaphores
    """
    B = out_ref.shape[0]

    # Kick off the embedding-row gathers first so these tiny DMAs overlap the
    # conv / mlp1 matmuls below.
    copies = []
    for b in range(B):                        # B is static -> fully unrolled
        cp = pltpu.make_async_copy(
            pe_hbm.at[pl.ds(t_ref[b], 1)],    # (1, H) row of the table in HBM
            emb_ref.at[pl.ds(b, 1)],          # (1, H) slot in VMEM scratch
            sem.at[b])
        cp.start()
        copies.append(cp)

    # Conv1d(D, D, kernel=3, padding=1) as a single matmul in flat layout.
    a = jnp.dot(x_ref[...], wconv_ref[...],
                preferred_element_type=jnp.float32) + bconv_ref[...]
    # TODO(synk): nn.Dropout(p=0.1) is identity in eval mode; training-mode
    # random dropout is not implemented here.

    # mlp1: Linear + ReLU.
    h = jnp.maximum(
        jnp.dot(a, w1_ref[...], preferred_element_type=jnp.float32)
        + b1_ref[...], 0.0)

    # Add time embedding (wait for the gathered rows).
    for cp in copies:
        cp.wait()
    h = h + emb_ref[...]

    # mlp2: Linear + ReLU + Linear.
    h2 = jnp.maximum(
        jnp.dot(h, w2_ref[...], preferred_element_type=jnp.float32)
        + b2_ref[...], 0.0)
    out = (jnp.dot(h2, w3_ref[...], preferred_element_type=jnp.float32)
           + b3_ref[...])

    out_ref[...] = out.astype(out_ref.dtype)


# ------------------------------ wrapper ------------------------------------- #

def mlp_noise_forward(xt, t, params):
    """Forward pass equivalent to MLP_noise.forward(xt, t) (eval mode)."""
    B, L, D = xt.shape
    H = params["w2"].shape[0]

    # Metadata-only reshape (contiguous), no HBM round trip.
    x_flat = xt.reshape(B, L * D)

    vmem = pl.BlockSpec(memory_space=pltpu.MemorySpace.VMEM)
    smem = pl.BlockSpec(memory_space=pltpu.MemorySpace.SMEM)
    hbm = pl.BlockSpec(memory_space=pl.ANY)

    out_flat = pl.pallas_call(
        mlp_noise_fused_kernel,
        out_shape=jax.ShapeDtypeStruct((B, L * D), xt.dtype),
        in_specs=[smem,            # t
                  vmem,            # x_flat
                  hbm,             # pe (stays in HBM, rows DMA'd in-kernel)
                  vmem, vmem,      # wconv, bconv
                  vmem, vmem,      # w1, b1
                  vmem, vmem,      # w2, b2
                  vmem, vmem],     # w3, b3
        out_specs=vmem,
        scratch_shapes=[pltpu.VMEM((B, H), jnp.float32),
                        pltpu.SemaphoreType.DMA((B,))],
    )(t, x_flat, params["pe"], params["wconv"], params["bconv"],
      params["w1"], params["b1"], params["w2"], params["b2"],
      params["w3"], params["b3"])

    return out_flat.reshape(B, L, D)


# ------------------------------ params -------------------------------------- #

def init_params(key, seq_len, input_dim, hidden_dim, timesteps):
    """Deterministic synthetic parameters matching MLP_noise.__init__ shapes.

    Linear weights are stored transposed ((in, out)) relative to PyTorch.
    Conv1d weights are generated as three (d_in, d_out) taps (PyTorch stores
    (out_ch, in_ch, k); a transpose would be needed to load trained weights)
    and are additionally folded, once at init time, into a block-tridiagonal
    (L*D, L*D) matrix acting on the L-major/D-minor flattened sequence.
    """
    D, L, H = input_dim, seq_len, hidden_dim
    ks = jax.random.split(key, 8)

    def u(k, shape, fan_in):
        bound = 1.0 / math.sqrt(fan_in)
        return jax.random.uniform(k, shape, jnp.float32, -bound, bound)

    wc = u(ks[0], (3, D, D), D * 3)        # (tap, d_in, d_out)
    bc = u(ks[1], (1, D), D * 3)
    w1 = u(ks[2], (L * D, H), L * D)
    b1 = u(ks[3], (1, H), L * D)
    w2 = u(ks[4], (H, H), H)
    b2 = u(ks[5], (1, H), H)
    w3 = u(ks[6], (H, L * D), H)
    b3 = u(ks[7], (1, L * D), H)

    # Fold the conv into a dense block-tridiagonal matrix (done once, offline).
    # out_flat[l*D + o] = sum_{l', i} x_flat[l'*D + i] * wconv[l'*D+i, l*D+o]
    # with wconv[(l+k-1)*D:(l+k)*D, l*D:(l+1)*D] = wc[k] (zero-padding folded
    # in by simply omitting out-of-range blocks).
    wconv = jnp.zeros((L * D, L * D), jnp.float32)
    for l in range(L):
        for k in range(3):
            lp = l + k - 1
            if 0 <= lp < L:
                wconv = wconv.at[lp * D:(lp + 1) * D, l * D:(l + 1) * D].set(wc[k])
    bconv = jnp.tile(bc, (1, L))           # bias depends on channel only

    # FixedTimeEmbeddings: standard non-trainable sinusoidal table (T, H).
    pos = jnp.arange(timesteps, dtype=jnp.float32)[:, None]
    div = jnp.exp(jnp.arange(0, H, 2, dtype=jnp.float32)
                  * (-math.log(10000.0) / H))
    pe = jnp.zeros((timesteps, H), jnp.float32)
    pe = pe.at[:, 0::2].set(jnp.sin(pos * div))
    pe = pe.at[:, 1::2].set(jnp.cos(pos * div))

    return dict(wc=wc, bc=bc, wconv=wconv, bconv=bconv,
                w1=w1, b1=b1, w2=w2, b2=b2, w3=w3, b3=b3, pe=pe)


# ------------------------------ reference ----------------------------------- #

def reference_forward(xt, t, params):
    """Pure-JAX reference mirroring the PyTorch forward (eval mode)."""
    B, L, D = xt.shape
    wc, bc = params["wc"], params["bc"]
    xpad = jnp.pad(xt, ((0, 0), (1, 1), (0, 0)))
    conv = (xpad[:, 0:L, :] @ wc[0]
            + xpad[:, 1:L + 1, :] @ wc[1]
            + xpad[:, 2:L + 2, :] @ wc[2]) + bc
    # PyTorch: conv -> permute back to (B, L, D) -> reshape(B, -1)  => L-major.
    flat = conv.reshape(B, L * D)
    emb = params["pe"][t]
    h = jax.nn.relu(flat @ params["w1"] + params["b1"]) + emb
    h2 = jax.nn.relu(h @ params["w2"] + params["b2"])
    out = h2 @ params["w3"] + params["b3"]
    return out.reshape(B, L, D)


# ------------------------------ main ----------------------------------------- #

if __name__ == "__main__":
    B, L, D, H, T = 2, 8, 4, 32, 1000      # batch, seq_len, input_dim, hidden
    key = jax.random.PRNGKey(0)
    kx, kt, kp = jax.random.split(key, 3)

    xt = jax.random.normal(kx, (B, L, D), jnp.float32)
    t = jax.random.randint(kt, (B,), 0, T)  # int32
    params = init_params(kp, L, D, H, T)

    fwd = jax.jit(mlp_noise_forward)
    out = fwd(xt, t, params)
    jax.block_until_ready(out)

    assert out.shape == (B, L, D) and out.dtype == jnp.float32
    ref = reference_forward(xt, t, params)
    assert jnp.allclose(out, ref, rtol=1e-4, atol=1e-4), (
        float(jnp.max(jnp.abs(out - ref))))
    print("KERNEL_OK")
</pallas_src>

<mosaic_0001>
module attributes {stable_mosaic.version = 11 : i64} {
  func.func @mlp_noise_fused_kernel(%arg0: memref<2xi32, #tpu.memory_space<smem>>, %arg1: memref<2x32xf32, #tpu.memory_space<vmem>>, %arg2: memref<1000x32xf32, #tpu.memory_space<any>>, %arg3: memref<32x32xf32, #tpu.memory_space<vmem>>, %arg4: memref<1x32xf32, #tpu.memory_space<vmem>>, %arg5: memref<32x32xf32, #tpu.memory_space<vmem>>, %arg6: memref<1x32xf32, #tpu.memory_space<vmem>>, %arg7: memref<32x32xf32, #tpu.memory_space<vmem>>, %arg8: memref<1x32xf32, #tpu.memory_space<vmem>>, %arg9: memref<32x32xf32, #tpu.memory_space<vmem>>, %arg10: memref<1x32xf32, #tpu.memory_space<vmem>>, %arg11: memref<2x32xf32, #tpu.memory_space<vmem>>, %arg12: memref<2x32xf32, #tpu.memory_space<vmem>>, %arg13: memref<2x!tpu.dma_semaphore, #tpu.memory_space<semaphore_mem>>) attributes {dimension_semantics = [], scalar_prefetch = 0 : i64, scratch_operands = 2 : i64, tpu.core_type = #tpu.core_type<tc>} {
    %c0 = arith.constant 0 : index
    %0 = memref.load %arg0[%c0] : memref<2xi32, #tpu.memory_space<smem>>
    %c0_i32 = arith.constant 0 : i32
    %c0_i32_0 = arith.constant 0 : i32
    %1 = tpu.memref_slice %arg2[%0, %c0_i32_0] : memref<1000x32xf32, #tpu.memory_space<any>> -> memref<1x32xf32, #tpu.memory_space<any>>
    %c0_i32_1 = arith.constant 0 : i32
    %c0_i32_2 = arith.constant 0 : i32
    %2 = tpu.memref_slice %arg12[%c0_i32_1, %c0_i32_2] : memref<2x32xf32, #tpu.memory_space<vmem>> -> memref<1x32xf32, #tpu.memory_space<vmem>>
    %3 = tpu.memref_slice %arg13[%c0_i32] : memref<2x!tpu.dma_semaphore, #tpu.memory_space<semaphore_mem>> -> memref<1x!tpu.dma_semaphore, #tpu.memory_space<semaphore_mem>>
    %4 = tpu.memref_squeeze %3 : memref<1x!tpu.dma_semaphore, #tpu.memory_space<semaphore_mem>> -> memref<!tpu.dma_semaphore, #tpu.memory_space<semaphore_mem>>
    tpu.enqueue_dma source(%1 : memref<1x32xf32, #tpu.memory_space<any>>) target(%2 : memref<1x32xf32, #tpu.memory_space<vmem>>) target_semaphore(%4 : memref<!tpu.dma_semaphore, #tpu.memory_space<semaphore_mem>>)
    %c1 = arith.constant 1 : index
    %5 = memref.load %arg0[%c1] : memref<2xi32, #tpu.memory_space<smem>>
    %c1_i32 = arith.constant 1 : i32
    %c0_i32_3 = arith.constant 0 : i32
    %6 = tpu.memref_slice %arg2[%5, %c0_i32_3] : memref<1000x32xf32, #tpu.memory_space<any>> -> memref<1x32xf32, #tpu.memory_space<any>>
    %c1_i32_4 = arith.constant 1 : i32
    %c0_i32_5 = arith.constant 0 : i32
    %7 = tpu.memref_slice %arg12[%c1_i32_4, %c0_i32_5] : memref<2x32xf32, #tpu.memory_space<vmem>> -> memref<1x32xf32, #tpu.memory_space<vmem>>
    %8 = tpu.memref_slice %arg13[%c1_i32] : memref<2x!tpu.dma_semaphore, #tpu.memory_space<semaphore_mem>> -> memref<1x!tpu.dma_semaphore, #tpu.memory_space<semaphore_mem>>
    %9 = tpu.memref_squeeze %8 : memref<1x!tpu.dma_semaphore, #tpu.memory_space<semaphore_mem>> -> memref<!tpu.dma_semaphore, #tpu.memory_space<semaphore_mem>>
    tpu.enqueue_dma source(%6 : memref<1x32xf32, #tpu.memory_space<any>>) target(%7 : memref<1x32xf32, #tpu.memory_space<vmem>>) target_semaphore(%9 : memref<!tpu.dma_semaphore, #tpu.memory_space<semaphore_mem>>)
    %c0_6 = arith.constant 0 : index
    %c0_7 = arith.constant 0 : index
    %10 = vector.load %arg1[%c0_6, %c0_7] : memref<2x32xf32, #tpu.memory_space<vmem>>, vector<2x32xf32>
    %c0_8 = arith.constant 0 : index
    %c0_9 = arith.constant 0 : index
    %11 = vector.load %arg3[%c0_8, %c0_9] : memref<32x32xf32, #tpu.memory_space<vmem>>, vector<32x32xf32>
    %cst = arith.constant dense<0.000000e+00> : vector<2x32xf32>
    %12 = tpu.matmul %10, %11, %cst {dimension_numbers = #tpu.dot_dimension_numbers<[1], [0], [0], [1], [0, 0, 1, 1], [], []>} : vector<2x32xf32>, vector<32x32xf32>, vector<2x32xf32> -> vector<2x32xf32>
    %c0_10 = arith.constant 0 : index
    %c0_11 = arith.constant 0 : index
    %13 = vector.load %arg4[%c0_10, %c0_11] : memref<1x32xf32, #tpu.memory_space<vmem>>, vector<1x32xf32>
    %14 = vector.broadcast %13 : vector<1x32xf32> to vector<2x32xf32>
    %15 = arith.addf %12, %14 : vector<2x32xf32>
    %c0_12 = arith.constant 0 : index
    %c0_13 = arith.constant 0 : index
    %16 = vector.load %arg5[%c0_12, %c0_13] : memref<32x32xf32, #tpu.memory_space<vmem>>, vector<32x32xf32>
    %cst_14 = arith.constant dense<0.000000e+00> : vector<2x32xf32>
    %17 = tpu.matmul %15, %16, %cst_14 {dimension_numbers = #tpu.dot_dimension_numbers<[1], [0], [0], [1], [0, 0, 1, 1], [], []>} : vector<2x32xf32>, vector<32x32xf32>, vector<2x32xf32> -> vector<2x32xf32>
    %c0_15 = arith.constant 0 : index
    %c0_16 = arith.constant 0 : index
    %18 = vector.load %arg6[%c0_15, %c0_16] : memref<1x32xf32, #tpu.memory_space<vmem>>, vector<1x32xf32>
    %19 = vector.broadcast %18 : vector<1x32xf32> to vector<2x32xf32>
    %20 = arith.addf %17, %19 : vector<2x32xf32>
    %cst_17 = arith.constant 0.000000e+00 : f32
    %21 = vector.broadcast %cst_17 : f32 to vector<2x32xf32>
    %22 = arith.maximumf %20, %21 : vector<2x32xf32>
    %c0_i32_18 = arith.constant 0 : i32
    %c0_i32_19 = arith.constant 0 : i32
    %23 = tpu.memref_slice %arg2[%0, %c0_i32_19] : memref<1000x32xf32, #tpu.memory_space<any>> -> memref<1x32xf32, #tpu.memory_space<any>>
    %c0_i32_20 = arith.constant 0 : i32
    %c0_i32_21 = arith.constant 0 : i32
    %24 = tpu.memref_slice %arg12[%c0_i32_20, %c0_i32_21] : memref<2x32xf32, #tpu.memory_space<vmem>> -> memref<1x32xf32, #tpu.memory_space<vmem>>
    %25 = tpu.memref_slice %arg13[%c0_i32_18] : memref<2x!tpu.dma_semaphore, #tpu.memory_space<semaphore_mem>> -> memref<1x!tpu.dma_semaphore, #tpu.memory_space<semaphore_mem>>
    %26 = tpu.memref_squeeze %25 : memref<1x!tpu.dma_semaphore, #tpu.memory_space<semaphore_mem>> -> memref<!tpu.dma_semaphore, #tpu.memory_space<semaphore_mem>>
    tpu.wait_dma2 semaphore(%26 : memref<!tpu.dma_semaphore, #tpu.memory_space<semaphore_mem>>) src(%23 : memref<1x32xf32, #tpu.memory_space<any>>) dst(%24 : memref<1x32xf32, #tpu.memory_space<vmem>>)
    %c1_i32_22 = arith.constant 1 : i32
    %c0_i32_23 = arith.constant 0 : i32
    %27 = tpu.memref_slice %arg2[%5, %c0_i32_23] : memref<1000x32xf32, #tpu.memory_space<any>> -> memref<1x32xf32, #tpu.memory_space<any>>
    %c1_i32_24 = arith.constant 1 : i32
    %c0_i32_25 = arith.constant 0 : i32
    %28 = tpu.memref_slice %arg12[%c1_i32_24, %c0_i32_25] : memref<2x32xf32, #tpu.memory_space<vmem>> -> memref<1x32xf32, #tpu.memory_space<vmem>>
    %29 = tpu.memref_slice %arg13[%c1_i32_22] : memref<2x!tpu.dma_semaphore, #tpu.memory_space<semaphore_mem>> -> memref<1x!tpu.dma_semaphore, #tpu.memory_space<semaphore_mem>>
    %30 = tpu.memref_squeeze %29 : memref<1x!tpu.dma_semaphore, #tpu.memory_space<semaphore_mem>> -> memref<!tpu.dma_semaphore, #tpu.memory_space<semaphore_mem>>
    tpu.wait_dma2 semaphore(%30 : memref<!tpu.dma_semaphore, #tpu.memory_space<semaphore_mem>>) src(%27 : memref<1x32xf32, #tpu.memory_space<any>>) dst(%28 : memref<1x32xf32, #tpu.memory_space<vmem>>)
    %c0_26 = arith.constant 0 : index
    %c0_27 = arith.constant 0 : index
    %31 = vector.load %arg12[%c0_26, %c0_27] : memref<2x32xf32, #tpu.memory_space<vmem>>, vector<2x32xf32>
    %32 = arith.addf %22, %31 : vector<2x32xf32>
    %c0_28 = arith.constant 0 : index
    %c0_29 = arith.constant 0 : index
    %33 = vector.load %arg7[%c0_28, %c0_29] : memref<32x32xf32, #tpu.memory_space<vmem>>, vector<32x32xf32>
    %cst_30 = arith.constant dense<0.000000e+00> : vector<2x32xf32>
    %34 = tpu.matmul %32, %33, %cst_30 {dimension_numbers = #tpu.dot_dimension_numbers<[1], [0], [0], [1], [0, 0, 1, 1], [], []>} : vector<2x32xf32>, vector<32x32xf32>, vector<2x32xf32> -> vector<2x32xf32>
    %c0_31 = arith.constant 0 : index
    %c0_32 = arith.constant 0 : index
    %35 = vector.load %arg8[%c0_31, %c0_32] : memref<1x32xf32, #tpu.memory_space<vmem>>, vector<1x32xf32>
    %36 = vector.broadcast %35 : vector<1x32xf32> to vector<2x32xf32>
    %37 = arith.addf %34, %36 : vector<2x32xf32>
    %cst_33 = arith.constant 0.000000e+00 : f32
    %38 = vector.broadcast %cst_33 : f32 to vector<2x32xf32>
    %39 = arith.maximumf %37, %38 : vector<2x32xf32>
    %c0_34 = arith.constant 0 : index
    %c0_35 = arith.constant 0 : index
    %40 = vector.load %arg9[%c0_34, %c0_35] : memref<32x32xf32, #tpu.memory_space<vmem>>, vector<32x32xf32>
    %cst_36 = arith.constant dense<0.000000e+00> : vector<2x32xf32>
    %41 = tpu.matmul %39, %40, %cst_36 {dimension_numbers = #tpu.dot_dimension_numbers<[1], [0], [0], [1], [0, 0, 1, 1], [], []>} : vector<2x32xf32>, vector<32x32xf32>, vector<2x32xf32> -> vector<2x32xf32>
    %c0_37 = arith.constant 0 : index
    %c0_38 = arith.constant 0 : index
    %42 = vector.load %arg10[%c0_37, %c0_38] : memref<1x32xf32, #tpu.memory_space<vmem>>, vector<1x32xf32>
    %43 = vector.broadcast %42 : vector<1x32xf32> to vector<2x32xf32>
    %44 = arith.addf %41, %43 : vector<2x32xf32>
    %c0_39 = arith.constant 0 : index
    %c0_40 = arith.constant 0 : index
    %45 = vector.load %arg11[%c0_39, %c0_40] : memref<2x32xf32, #tpu.memory_space<vmem>>, vector<2x32xf32>
    tpu.vector_store %arg11[%c0_39, %c0_40], %44 {strides = array<i32>} : memref<2x32xf32, #tpu.memory_space<vmem>>, vector<2x32xf32>,
    return
  }
}

</mosaic_0001>

<llo_original>
// kernel: mlp_noise_forward.1
$region0: #{mlp_noise_forward.1}
  #allocation0 [shape = 'u32[]', space=smem, size = 0x4, offset = 0x4, fixed_abs, tag = 'smem constant byte address 0x4 - core index']
  #allocation1 [shape = 'u32[144,128]{1,0:T(1,128)}', space=vmem, size = 0x12000, scoped, tag = 'internal scratch']
  #allocation2 [shape = 'f32[2,32]{1,0:T(2,128)}', space=vmem, size = 0x400, scoped, tag = 'scratch operand']
  #allocation3 [shape = 's32[2]{0}', space=sflag, size = 0x8, scoped, tag = 'scratch operand']
  #allocation6 [shape = 's32[]', space=sflag, size = 0x4, offset = 0, fixed_abs, tag = 'sflag constant byte address 0x0 - dummy sync flag']
  #allocation7 [shape = 's32[]', space=sflag, size = 0x4, offset = 0, fixed_abs, tag = 'sflag constant byte address 0x0 - dummy sync flag']
  %s0 = inlined_call_operand.vmem [shape: s32[2], index: 0, kind: input, shape index: {}]
  %s1 = inlined_call_operand.vmem [shape: f32[2,32], index: 1, kind: input, shape index: {}]
  %s2 = inlined_call_operand.vmem [shape: f32[1000,32], index: 2, kind: input, shape index: {}]
  %s3 = inlined_call_operand.vmem [shape: f32[32,32], index: 3, kind: input, shape index: {}]
  %s4 = inlined_call_operand.vmem [shape: f32[1,32], index: 4, kind: input, shape index: {}]
  %s5 = inlined_call_operand.vmem [shape: f32[32,32], index: 5, kind: input, shape index: {}]
  %s6 = inlined_call_operand.vmem [shape: f32[1,32], index: 6, kind: input, shape index: {}]
  %s7 = inlined_call_operand.vmem [shape: f32[32,32], index: 7, kind: input, shape index: {}]
  %s8 = inlined_call_operand.vmem [shape: f32[1,32], index: 8, kind: input, shape index: {}]
  %s9 = inlined_call_operand.vmem [shape: f32[32,32], index: 9, kind: input, shape index: {}]
  %s10 = inlined_call_operand.vmem [shape: f32[1,32], index: 10, kind: input, shape index: {}]
  %s11 = inlined_call_operand.vmem [shape: f32[2,32], index: 11, kind: output, shape index: {}]
  %s12 = sld [smem:[#allocation0]]
  $region114: #{mlp_noise_forward.1} parent=0
    _
  %s14 = ssub.s32 1, %s12
  %s15 = scalar_select 0, %s14, %s12
  $region1: #{mlp_noise_forward.1} parent=0
    #allocation4 [shape = 'u8[512]{0}', space=smem, size = 0x200, scoped, tag = 'input window, operand 0, single buffered']
    #allocation5 [shape = 's32[1]{0}', space=sflag, size = 0x4, scoped, tag = 'scoped memory for mlp_noise_forward.1']
    %16 = vsyncpa [#allocation5], 0
    // Predicated region
    $region2: #{mlp_noise_forward.1} parent=1 // pred_check
      _
    $region3: #{mlp_noise_forward.1} parent=1 // pred_check_branch
      %18 = sbr.rel (0) target = $region5
    $region4: #{mlp_noise_forward.1} parent=1 // pred_region
      %s20 = ssub.s32 16, 16
      %21 = vsyncadd [#allocation5], %s20
      %s23 = sshll.u32 %s0, 4
      %s24 = int_to_ptr.vmem [resolvable:$true] %s23
      %26 = dma.vmem_to_smem %s24, 16, [#allocation4], [#allocation5]
    $region5: #{mlp_noise_forward.1} parent=1 // pred_fallthru
      _
    // Predicated region
    $region6: #{mlp_noise_forward.1} parent=1 // pred_check
      _
    $region7: #{mlp_noise_forward.1} parent=1 // pred_check_branch
      %28 = sbr.rel (0) target = $region9
    $region8: #{mlp_noise_forward.1} parent=1 // pred_region
      _
    $region9: #{mlp_noise_forward.1} parent=1 // pred_fallthru
      _
    // Predicated region
    $region10: #{mlp_noise_forward.1} parent=1 // pred_check
      _
    $region11: #{mlp_noise_forward.1} parent=1 // pred_check_branch
      %30 = sbr.rel (0) target = $region13
    $region12: #{mlp_noise_forward.1} parent=1 // pred_region
      _
    $region13: #{mlp_noise_forward.1} parent=1 // pred_fallthru
      _
    // Predicated region
    $region14: #{mlp_noise_forward.1} parent=1 // pred_check
      _
    $region15: #{mlp_noise_forward.1} parent=1 // pred_check_branch
      %32 = sbr.rel (0) target = $region17
    $region16: #{mlp_noise_forward.1} parent=1 // pred_region
      _
    $region17: #{mlp_noise_forward.1} parent=1 // pred_fallthru
      _
    // Predicated region
    $region18: #{mlp_noise_forward.1} parent=1 // pred_check
      _
    $region19: #{mlp_noise_forward.1} parent=1 // pred_check_branch
      %34 = sbr.rel (0) target = $region21
    $region20: #{mlp_noise_forward.1} parent=1 // pred_region
      _
    $region21: #{mlp_noise_forward.1} parent=1 // pred_fallthru
      _
    // Predicated region
    $region22: #{mlp_noise_forward.1} parent=1 // pred_check
      _
    $region23: #{mlp_noise_forward.1} parent=1 // pred_check_branch
      %36 = sbr.rel (0) target = $region25
    $region24: #{mlp_noise_forward.1} parent=1 // pred_region
      _
    $region25: #{mlp_noise_forward.1} parent=1 // pred_fallthru
      _
    // Predicated region
    $region26: #{mlp_noise_forward.1} parent=1 // pred_check
      _
    $region27: #{mlp_noise_forward.1} parent=1 // pred_check_branch
      %38 = sbr.rel (0) target = $region29
    $region28: #{mlp_noise_forward.1} parent=1 // pred_region
      _
    $region29: #{mlp_noise_forward.1} parent=1 // pred_fallthru
      _
    // Predicated region
    $region30: #{mlp_noise_forward.1} parent=1 // pred_check
      _
    $region31: #{mlp_noise_forward.1} parent=1 // pred_check_branch
      %40 = sbr.rel (0) target = $region33
    $region32: #{mlp_noise_forward.1} parent=1 // pred_region
      _
    $region33: #{mlp_noise_forward.1} parent=1 // pred_fallthru
      _
    // Predicated region
    $region34: #{mlp_noise_forward.1} parent=1 // pred_check
      _
    $region35: #{mlp_noise_forward.1} parent=1 // pred_check_branch
      %42 = sbr.rel (0) target = $region37
    $region36: #{mlp_noise_forward.1} parent=1 // pred_region
      _
    $region37: #{mlp_noise_forward.1} parent=1 // pred_fallthru
      _
    // Predicated region
    $region38: #{mlp_noise_forward.1} parent=1 // pred_check
      _
    $region39: #{mlp_noise_forward.1} parent=1 // pred_check_branch
      %44 = sbr.rel (0) target = $region41
    $region40: #{mlp_noise_forward.1} parent=1 // pred_region
      _
    $region41: #{mlp_noise_forward.1} parent=1 // pred_fallthru
      _
    // Predicated region
    $region42: #{mlp_noise_forward.1} parent=1 // pred_check
      _
    $region43: #{mlp_noise_forward.1} parent=1 // pred_check_branch
      %46 = sbr.rel (0) target = $region45
    $region44: #{mlp_noise_forward.1} parent=1 // pred_region
      %47 = dma.done [#allocation5], 16
    $region45: #{mlp_noise_forward.1} parent=1 // pred_fallthru
      _
    %48 = sfence
    %s49 = sld [smem:[#allocation4]]
    %s50 = scalar_lea.vmem %s2, %s49
    %p52 = scmp.lt.u32.totalorder 1, 8
    %p53 = pneg %p52
    // Predicated region
    $region46: #{mlp_noise_forward.1} parent=1 // pred_check
      _
    $region47: #{mlp_noise_forward.1} parent=1 // pred_check_branch
      %55 = sbr.rel (%p52) target = $region49
    $region48: #{mlp_noise_forward.1} parent=1 // pred_region
      %s71 = sand.u32 1, 7
      %p72 = scmp.eq.s32.totalorder %s71, 0
      %p73 = pneg %p72
      // Predicated region
      $region61: #{mlp_noise_forward.1} parent=48 // pred_check
        _
      $region62: #{mlp_noise_forward.1} parent=48 // pred_check_branch
        %75 = sbr.rel (%p72) target = $region64
      $region63: #{mlp_noise_forward.1} parent=48 // pred_region
        %s76 = sand.u32 1, 7
        %s77 = ssub.s32 1, %s76
        %s78 = scalar_lea.vmem %s50, %s77
        %s79 = ssub.s32 1, %s76
        %s80 = scalar_lea.vmem [#allocation2], %s79
        %s81 = sshll.u32 1, %s76
        %s82 = ssub.s32 %s81, 1
        loop: start=0, step=1, limit=1
        $region65: #{mlp_noise_forward.1} parent=63 // loop_pre_header
          _
        $region66: #{mlp_noise_forward.1} parent=63 // loop_header
          %s84 = sphi 0, %s88
          %p85 = scmp.ge.s32.totalorder %s84, 1
          %s89 = sphi %s78, %s78
          %s90 = sphi %s80, %s80
        $region67: #{mlp_noise_forward.1} parent=63 // loop_header_branch
          %87 = sbr.rel (%p85) target = $region71
        $region68: #{mlp_noise_forward.1} parent=63 // loop_body
          %v91 = vld [vmem:[%s89] sm:%s82]
          %92 = vst [vmem:[%s90] sm:%s82] %v91
        $region69: #{mlp_noise_forward.1} parent=63 // loop_footer
          %s88 = sadd.s32 1, %s84
        $region70: #{mlp_noise_forward.1} parent=63 // loop_footer_branch
          %83 = sbr.rel target = $region66
        $region71: #{mlp_noise_forward.1} parent=63 // loop_exit
          _
      $region64: #{mlp_noise_forward.1} parent=48 // pred_fallthru
        _
    $region49: #{mlp_noise_forward.1} parent=1 // pred_fallthru
      _
    // Predicated region
    $region50: #{mlp_noise_forward.1} parent=1 // pred_check
      %p56 = pneg %p52
    $region51: #{mlp_noise_forward.1} parent=1 // pred_check_branch
      %58 = sbr.rel (%p56) target = $region53
    $region52: #{mlp_noise_forward.1} parent=1 // pred_region
      %s59 = sshll.u32 1, 1
      %s60 = ssub.s32 %s59, 1
      loop: start=0, step=1, limit=1
      $region54: #{mlp_noise_forward.1} parent=52 // loop_pre_header
        _
      $region55: #{mlp_noise_forward.1} parent=52 // loop_header
        %s62 = sphi 0, %s66
        %p63 = scmp.ge.s32.totalorder %s62, 1
        %s67 = sphi %s50, %s50
        %s68 = sphi [#allocation2], [#allocation2]
      $region56: #{mlp_noise_forward.1} parent=52 // loop_header_branch
        %65 = sbr.rel (%p63) target = $region60
      $region57: #{mlp_noise_forward.1} parent=52 // loop_body
        %v69 = vld [vmem:[%s67] sm:%s60]
        %70 = vst [vmem:[%s68] sm:%s60] %v69
      $region58: #{mlp_noise_forward.1} parent=52 // loop_footer
        %s66 = sadd.s32 1, %s62
      $region59: #{mlp_noise_forward.1} parent=52 // loop_footer_branch
        %61 = sbr.rel target = $region55
      $region60: #{mlp_noise_forward.1} parent=52 // loop_exit
        _
    $region53: #{mlp_noise_forward.1} parent=1 // pred_fallthru
      _
    // Predicated region
    $region72: #{mlp_noise_forward.1} parent=1 // pred_check
      _
    $region73: #{mlp_noise_forward.1} parent=1 // pred_check_branch
      %95 = sbr.rel (0) target = $region75
    $region74: #{mlp_noise_forward.1} parent=1 // pred_region
      %96 = vsyncadd [#allocation3], 16
    $region75: #{mlp_noise_forward.1} parent=1 // pred_fallthru
      _
    %s97 = sld [smem:[#allocation4 + $0x1]]
    %s98 = scalar_lea.vmem %s2, %s97
    %s99 = scalar_lea.vmem [#allocation2], 1
    %s100 = scalar_lea.sflag [#allocation3], 1
    %p102 = scmp.lt.u32.totalorder 1, 8
    %p103 = pneg %p102
    // Predicated region
    $region76: #{mlp_noise_forward.1} parent=1 // pred_check
      _
    $region77: #{mlp_noise_forward.1} parent=1 // pred_check_branch
      %105 = sbr.rel (%p102) target = $region79
    $region78: #{mlp_noise_forward.1} parent=1 // pred_region
      %s121 = sand.u32 1, 7
      %p122 = scmp.eq.s32.totalorder %s121, 0
      %p123 = pneg %p122
      // Predicated region
      $region91: #{mlp_noise_forward.1} parent=78 // pred_check
        _
      $region92: #{mlp_noise_forward.1} parent=78 // pred_check_branch
        %125 = sbr.rel (%p122) target = $region94
      $region93: #{mlp_noise_forward.1} parent=78 // pred_region
        %s126 = sand.u32 1, 7
        %s127 = ssub.s32 1, %s126
        %s128 = scalar_lea.vmem %s98, %s127
        %s129 = ssub.s32 1, %s126
        %s130 = scalar_lea.vmem %s99, %s129 [#allocation2]
        %s131 = sshll.u32 1, %s126
        %s132 = ssub.s32 %s131, 1
        loop: start=0, step=1, limit=1
        $region95: #{mlp_noise_forward.1} parent=93 // loop_pre_header
          _
        $region96: #{mlp_noise_forward.1} parent=93 // loop_header
          %s134 = sphi 0, %s138
          %p135 = scmp.ge.s32.totalorder %s134, 1
          %s139 = sphi %s128, %s128
          %s140 = sphi %s130, %s130
        $region97: #{mlp_noise_forward.1} parent=93 // loop_header_branch
          %137 = sbr.rel (%p135) target = $region101
        $region98: #{mlp_noise_forward.1} parent=93 // loop_body
          %v141 = vld [vmem:[%s139] sm:%s132]
          %142 = vst [vmem:[%s140] sm:%s132] %v141
        $region99: #{mlp_noise_forward.1} parent=93 // loop_footer
          %s138 = sadd.s32 1, %s134
        $region100: #{mlp_noise_forward.1} parent=93 // loop_footer_branch
          %133 = sbr.rel target = $region96
        $region101: #{mlp_noise_forward.1} parent=93 // loop_exit
          _
      $region94: #{mlp_noise_forward.1} parent=78 // pred_fallthru
        _
    $region79: #{mlp_noise_forward.1} parent=1 // pred_fallthru
      _
    // Predicated region
    $region80: #{mlp_noise_forward.1} parent=1 // pred_check
      %p106 = pneg %p102
    $region81: #{mlp_noise_forward.1} parent=1 // pred_check_branch
      %108 = sbr.rel (%p106) target = $region83
    $region82: #{mlp_noise_forward.1} parent=1 // pred_region
      %s109 = sshll.u32 1, 1
      %s110 = ssub.s32 %s109, 1
      loop: start=0, step=1, limit=1
      $region84: #{mlp_noise_forward.1} parent=82 // loop_pre_header
        _
      $region85: #{mlp_noise_forward.1} parent=82 // loop_header
        %s112 = sphi 0, %s116
        %p113 = scmp.ge.s32.totalorder %s112, 1
        %s117 = sphi %s98, %s98
        %s118 = sphi %s99, %s99
      $region86: #{mlp_noise_forward.1} parent=82 // loop_header_branch
        %115 = sbr.rel (%p113) target = $region90
      $region87: #{mlp_noise_forward.1} parent=82 // loop_body
        %v119 = vld [vmem:[%s117] sm:%s110]
        %120 = vst [vmem:[%s118] sm:%s110] %v119
      $region88: #{mlp_noise_forward.1} parent=82 // loop_footer
        %s116 = sadd.s32 1, %s112
      $region89: #{mlp_noise_forward.1} parent=82 // loop_footer_branch
        %111 = sbr.rel target = $region85
      $region90: #{mlp_noise_forward.1} parent=82 // loop_exit
        _
    $region83: #{mlp_noise_forward.1} parent=1 // pred_fallthru
      _
    // Predicated region
    $region102: #{mlp_noise_forward.1} parent=1 // pred_check
      _
    $region103: #{mlp_noise_forward.1} parent=1 // pred_check_branch
      %145 = sbr.rel (0) target = $region105
    $region104: #{mlp_noise_forward.1} parent=1 // pred_region
      %146 = vsyncadd %s100, 16
    $region105: #{mlp_noise_forward.1} parent=1 // pred_fallthru
      _
    %v147 = vld [vmem:[%s1] sm:$0x3]
    %v148 = vld [vmem:[%s3] sm:$0xff]
    %v149 = vld [vmem:[%s3 + $0x8] sm:$0xff]
    %v150 = vld [vmem:[%s3 + $0x10] sm:$0xff]
    %v151 = vld [vmem:[%s3 + $0x18] sm:$0xff]
    %v152 = vld [vmem:[%s4] sm:$0x1]
    %v154 = vlaneseq
    %v155 = vshrl.u32 %v154, 7
    %v156 = vsub.s32 0, %v155
    %v157 = vrot.slane %v152, %v156
    %vm159 = vcmask 261120
    %v161 = vsel %vm159, %v147, 0
    %163 = vmatprep.subr.mxu0 0.0
    %164 = vmatpush1.msra.mxu0 0.0
    %165 = vmatprep.subr.mxu0 0.0
    %166 = vmatpush1.msra.mxu0 0.0
    %167 = vmatprep.subr.mxu0 0.0
    %168 = vmatpush1.msra.mxu0 0.0
    %169 = vmatprep.subr.mxu0 0.0
    %170 = vmatpush1.msra.mxu0 0.0
    %171 = vmatprep.subr.mxu0 0.0
    %172 = vmatpush1.msra.mxu0 0.0
    %173 = vmatprep.subr.mxu0 0.0
    %174 = vmatpush1.msra.mxu0 0.0
    %175 = vmatprep.subr.mxu0 0.0
    %176 = vmatpush1.msra.mxu0 0.0
    %177 = vmatprep.subr.mxu0 0.0
    %178 = vmatpush1.msra.mxu0 0.0
    %179 = vmatprep.subr.mxu0 0.0
    %180 = vmatpush1.msra.mxu0 0.0
    %181 = vmatprep.subr.mxu0 0.0
    %182 = vmatpush1.msra.mxu0 0.0
    %183 = vmatprep.subr.mxu0 0.0
    %184 = vmatpush1.msra.mxu0 0.0
    %185 = vmatprep.subr.mxu0 0.0
    %186 = vmatpush1.msra.mxu0 0.0
    %187 = vmatprep.subr.mxu0 0.0
    %188 = vmatpush1.msra.mxu0 %v151
    %189 = vmatprep.subr.mxu0 0.0
    %190 = vmatpush1.msra.mxu0 %v150
    %191 = vmatprep.subr.mxu0 0.0
    %192 = vmatpush1.msra.mxu0 %v149
    %193 = vmatprep.subr.mxu0 0.0
    %194 = vmatpush1.msra.mxu0 %v148
    %195 = vmatprep.subr.mxu0 0.0
    %196 = vmatpush2.msra.mxu0 0.0
    %197 = vmatprep.subr.mxu0 0.0
    %198 = vmatpush2.msra.mxu0 0.0
    %199 = vmatprep.subr.mxu0 0.0
    %200 = vmatpush2.msra.mxu0 0.0
    %201 = vmatprep.subr.mxu0 0.0
    %202 = vmatpush2.msra.mxu0 0.0
    %203 = vmatprep.subr.mxu0 0.0
    %204 = vmatpush2.msra.mxu0 0.0
    %205 = vmatprep.subr.mxu0 0.0
    %206 = vmatpush2.msra.mxu0 0.0
    %207 = vmatprep.subr.mxu0 0.0
    %208 = vmatpush2.msra.mxu0 0.0
    %209 = vmatprep.subr.mxu0 0.0
    %210 = vmatpush2.msra.mxu0 0.0
    %211 = vmatprep.subr.mxu0 0.0
    %212 = vmatpush2.msra.mxu0 0.0
    %213 = vmatprep.subr.mxu0 0.0
    %214 = vmatpush2.msra.mxu0 0.0
    %215 = vmatprep.subr.mxu0 0.0
    %216 = vmatpush2.msra.mxu0 0.0
    %217 = vmatprep.subr.mxu0 0.0
    %218 = vmatpush2.msra.mxu0 0.0
    %219 = vmatprep.subr.mxu0 0.0
    %220 = vmatpush2.msra.mxu0 0.0
    %221 = vmatprep.subr.mxu0 0.0
    %222 = vmatpush2.msra.mxu0 0.0
    %223 = vmatprep.subr.mxu0 0.0
    %224 = vmatpush2.msra.mxu0 0.0
    %225 = vmatprep.subr.mxu0 0.0
    %226 = vmatpush2.msra.mxu0 0.0
    %227 = vmatprep.mubr.f32.mxu0 0.0
    %228 = vmatmul.mubr.f32.gmra.mxu0 %v161
    %v229 = vpop.f32.mrf.mxu0
    %v230 = vadd.f32 %v157, %v229
    %v231 = vpop.f32.mrf.mxu0
    %232 = vdwg.mxu0
    %v233 = vld [vmem:[%s5] sm:$0xff]
    %v234 = vld [vmem:[%s5 + $0x8] sm:$0xff]
    %v235 = vld [vmem:[%s5 + $0x10] sm:$0xff]
    %v236 = vld [vmem:[%s5 + $0x18] sm:$0xff]
    %v237 = vld [vmem:[%s6] sm:$0x1]
    %v239 = vlaneseq
    %v240 = vshrl.u32 %v239, 7
    %v241 = vsub.s32 0, %v240
    %v242 = vrot.slane %v237, %v241
    %v245 = vsel %vm159, %v230, 0
    %247 = vmatprep.subr.mxu0 0.0
    %248 = vmatpush1.msra.mxu0 0.0
    %249 = vmatprep.subr.mxu0 0.0
    %250 = vmatpush1.msra.mxu0 0.0
    %251 = vmatprep.subr.mxu0 0.0
    %252 = vmatpush1.msra.mxu0 0.0
    %253 = vmatprep.subr.mxu0 0.0
    %254 = vmatpush1.msra.mxu0 0.0
    %255 = vmatprep.subr.mxu0 0.0
    %256 = vmatpush1.msra.mxu0 0.0
    %257 = vmatprep.subr.mxu0 0.0
    %258 = vmatpush1.msra.mxu0 0.0
    %259 = vmatprep.subr.mxu0 0.0
    %260 = vmatpush1.msra.mxu0 0.0
    %261 = vmatprep.subr.mxu0 0.0
    %262 = vmatpush1.msra.mxu0 0.0
    %263 = vmatprep.subr.mxu0 0.0
    %264 = vmatpush1.msra.mxu0 0.0
    %265 = vmatprep.subr.mxu0 0.0
    %266 = vmatpush1.msra.mxu0 0.0
    %267 = vmatprep.subr.mxu0 0.0
    %268 = vmatpush1.msra.mxu0 0.0
    %269 = vmatprep.subr.mxu0 0.0
    %270 = vmatpush1.msra.mxu0 0.0
    %271 = vmatprep.subr.mxu0 0.0
    %272 = vmatpush1.msra.mxu0 %v236
    %273 = vmatprep.subr.mxu0 0.0
    %274 = vmatpush1.msra.mxu0 %v235
    %275 = vmatprep.subr.mxu0 0.0
    %276 = vmatpush1.msra.mxu0 %v234
    %277 = vmatprep.subr.mxu0 0.0
    %278 = vmatpush1.msra.mxu0 %v233
    %279 = vmatprep.subr.mxu0 0.0
    %280 = vmatpush2.msra.mxu0 0.0
    %281 = vmatprep.subr.mxu0 0.0
    %282 = vmatpush2.msra.mxu0 0.0
    %283 = vmatprep.subr.mxu0 0.0
    %284 = vmatpush2.msra.mxu0 0.0
    %285 = vmatprep.subr.mxu0 0.0
    %286 = vmatpush2.msra.mxu0 0.0
    %287 = vmatprep.subr.mxu0 0.0
    %288 = vmatpush2.msra.mxu0 0.0
    %289 = vmatprep.subr.mxu0 0.0
    %290 = vmatpush2.msra.mxu0 0.0
    %291 = vmatprep.subr.mxu0 0.0
    %292 = vmatpush2.msra.mxu0 0.0
    %293 = vmatprep.subr.mxu0 0.0
    %294 = vmatpush2.msra.mxu0 0.0
    %295 = vmatprep.subr.mxu0 0.0
    %296 = vmatpush2.msra.mxu0 0.0
    %297 = vmatprep.subr.mxu0 0.0
    %298 = vmatpush2.msra.mxu0 0.0
    %299 = vmatprep.subr.mxu0 0.0
    %300 = vmatpush2.msra.mxu0 0.0
    %301 = vmatprep.subr.mxu0 0.0
    %302 = vmatpush2.msra.mxu0 0.0
    %303 = vmatprep.subr.mxu0 0.0
    %304 = vmatpush2.msra.mxu0 0.0
    %305 = vmatprep.subr.mxu0 0.0
    %306 = vmatpush2.msra.mxu0 0.0
    %307 = vmatprep.subr.mxu0 0.0
    %308 = vmatpush2.msra.mxu0 0.0
    %309 = vmatprep.subr.mxu0 0.0
    %310 = vmatpush2.msra.mxu0 0.0
    %311 = vmatprep.mubr.f32.mxu0 0.0
    %312 = vmatmul.mubr.f32.gmra.mxu0 %v245
    %v313 = vpop.f32.mrf.mxu0
    %v314 = vadd.f32 %v242, %v313
    %v315 = vpop.f32.mrf.mxu0
    %316 = vdwg.mxu0
    %v317 = vmax.f32 %v314, 0.0
    %s318 = smul.u32 1, 1
    %s319 = sshll.u32 %s318, 4
    %320 = dma.done [#allocation3], %s319
    %s321 = sshll.u32 %s318, 4
    %322 = dma.done %s100, %s321
    %v323 = vld [vmem:[#allocation2] sm:$0x3]
    %v324 = vadd.f32 %v317, %v323
    %v325 = vld [vmem:[%s7] sm:$0xff]
    %v326 = vld [vmem:[%s7 + $0x8] sm:$0xff]
    %v327 = vld [vmem:[%s7 + $0x10] sm:$0xff]
    %v328 = vld [vmem:[%s7 + $0x18] sm:$0xff]
    %v329 = vld [vmem:[%s8] sm:$0x1]
    %v331 = vlaneseq
    %v332 = vshrl.u32 %v331, 7
    %v333 = vsub.s32 0, %v332
    %v334 = vrot.slane %v329, %v333
    %v337 = vsel %vm159, %v324, 0
    %339 = vmatprep.subr.mxu0 0.0
    %340 = vmatpush1.msra.mxu0 0.0
    %341 = vmatprep.subr.mxu0 0.0
    %342 = vmatpush1.msra.mxu0 0.0
    %343 = vmatprep.subr.mxu0 0.0
    %344 = vmatpush1.msra.mxu0 0.0
    %345 = vmatprep.subr.mxu0 0.0
    %346 = vmatpush1.msra.mxu0 0.0
    %347 = vmatprep.subr.mxu0 0.0
    %348 = vmatpush1.msra.mxu0 0.0
    %349 = vmatprep.subr.mxu0 0.0
    %350 = vmatpush1.msra.mxu0 0.0
    %351 = vmatprep.subr.mxu0 0.0
    %352 = vmatpush1.msra.mxu0 0.0
    %353 = vmatprep.subr.mxu0 0.0
    %354 = vmatpush1.msra.mxu0 0.0
    %355 = vmatprep.subr.mxu0 0.0
    %356 = vmatpush1.msra.mxu0 0.0
    %357 = vmatprep.subr.mxu0 0.0
    %358 = vmatpush1.msra.mxu0 0.0
    %359 = vmatprep.subr.mxu0 0.0
    %360 = vmatpush1.msra.mxu0 0.0
    %361 = vmatprep.subr.mxu0 0.0
    %362 = vmatpush1.msra.mxu0 0.0
    %363 = vmatprep.subr.mxu0 0.0
    %364 = vmatpush1.msra.mxu0 %v328
    %365 = vmatprep.subr.mxu0 0.0
    %366 = vmatpush1.msra.mxu0 %v327
    %367 = vmatprep.subr.mxu0 0.0
    %368 = vmatpush1.msra.mxu0 %v326
    %369 = vmatprep.subr.mxu0 0.0
    %370 = vmatpush1.msra.mxu0 %v325
    %371 = vmatprep.subr.mxu0 0.0
    %372 = vmatpush2.msra.mxu0 0.0
    %373 = vmatprep.subr.mxu0 0.0
    %374 = vmatpush2.msra.mxu0 0.0
    %375 = vmatprep.subr.mxu0 0.0
    %376 = vmatpush2.msra.mxu0 0.0
    %377 = vmatprep.subr.mxu0 0.0
    %378 = vmatpush2.msra.mxu0 0.0
    %379 = vmatprep.subr.mxu0 0.0
    %380 = vmatpush2.msra.mxu0 0.0
    %381 = vmatprep.subr.mxu0 0.0
    %382 = vmatpush2.msra.mxu0 0.0
    %383 = vmatprep.subr.mxu0 0.0
    %384 = vmatpush2.msra.mxu0 0.0
    %385 = vmatprep.subr.mxu0 0.0
    %386 = vmatpush2.msra.mxu0 0.0
    %387 = vmatprep.subr.mxu0 0.0
    %388 = vmatpush2.msra.mxu0 0.0
    %389 = vmatprep.subr.mxu0 0.0
    %390 = vmatpush2.msra.mxu0 0.0
    %391 = vmatprep.subr.mxu0 0.0
    %392 = vmatpush2.msra.mxu0 0.0
    %393 = vmatprep.subr.mxu0 0.0
    %394 = vmatpush2.msra.mxu0 0.0
    %395 = vmatprep.subr.mxu0 0.0
    %396 = vmatpush2.msra.mxu0 0.0
    %397 = vmatprep.subr.mxu0 0.0
    %398 = vmatpush2.msra.mxu0 0.0
    %399 = vmatprep.subr.mxu0 0.0
    %400 = vmatpush2.msra.mxu0 0.0
    %401 = vmatprep.subr.mxu0 0.0
    %402 = vmatpush2.msra.mxu0 0.0
    %403 = vmatprep.mubr.f32.mxu0 0.0
    %404 = vmatmul.mubr.f32.gmra.mxu0 %v337
    %v405 = vpop.f32.mrf.mxu0
    %v406 = vadd.f32 %v334, %v405
    %v407 = vpop.f32.mrf.mxu0
    %408 = vdwg.mxu0
    %v409 = vmax.f32 %v406, 0.0
    %v410 = vld [vmem:[%s9] sm:$0xff]
    %v411 = vld [vmem:[%s9 + $0x8] sm:$0xff]
    %v412 = vld [vmem:[%s9 + $0x10] sm:$0xff]
    %v413 = vld [vmem:[%s9 + $0x18] sm:$0xff]
    %v414 = vld [vmem:[%s10] sm:$0x1]
    %v416 = vlaneseq
    %v417 = vshrl.u32 %v416, 7
    %v418 = vsub.s32 0, %v417
    %v419 = vrot.slane %v414, %v418
    %v422 = vsel %vm159, %v409, 0
    %424 = vmatprep.subr.mxu0 0.0
    %425 = vmatpush1.msra.mxu0 0.0
    %426 = vmatprep.subr.mxu0 0.0
    %427 = vmatpush1.msra.mxu0 0.0
    %428 = vmatprep.subr.mxu0 0.0
    %429 = vmatpush1.msra.mxu0 0.0
    %430 = vmatprep.subr.mxu0 0.0
    %431 = vmatpush1.msra.mxu0 0.0
    %432 = vmatprep.subr.mxu0 0.0
    %433 = vmatpush1.msra.mxu0 0.0
    %434 = vmatprep.subr.mxu0 0.0
    %435 = vmatpush1.msra.mxu0 0.0
    %436 = vmatprep.subr.mxu0 0.0
    %437 = vmatpush1.msra.mxu0 0.0
    %438 = vmatprep.subr.mxu0 0.0
    %439 = vmatpush1.msra.mxu0 0.0
    %440 = vmatprep.subr.mxu0 0.0
    %441 = vmatpush1.msra.mxu0 0.0
    %442 = vmatprep.subr.mxu0 0.0
    %443 = vmatpush1.msra.mxu0 0.0
    %444 = vmatprep.subr.mxu0 0.0
    %445 = vmatpush1.msra.mxu0 0.0
    %446 = vmatprep.subr.mxu0 0.0
    %447 = vmatpush1.msra.mxu0 0.0
    %448 = vmatprep.subr.mxu0 0.0
    %449 = vmatpush1.msra.mxu0 %v413
    %450 = vmatprep.subr.mxu0 0.0
    %451 = vmatpush1.msra.mxu0 %v412
    %452 = vmatprep.subr.mxu0 0.0
    %453 = vmatpush1.msra.mxu0 %v411
    %454 = vmatprep.subr.mxu0 0.0
    %455 = vmatpush1.msra.mxu0 %v410
    %456 = vmatprep.subr.mxu0 0.0
    %457 = vmatpush2.msra.mxu0 0.0
    %458 = vmatprep.subr.mxu0 0.0
    %459 = vmatpush2.msra.mxu0 0.0
    %460 = vmatprep.subr.mxu0 0.0
    %461 = vmatpush2.msra.mxu0 0.0
    %462 = vmatprep.subr.mxu0 0.0
    %463 = vmatpush2.msra.mxu0 0.0
    %464 = vmatprep.subr.mxu0 0.0
    %465 = vmatpush2.msra.mxu0 0.0
    %466 = vmatprep.subr.mxu0 0.0
    %467 = vmatpush2.msra.mxu0 0.0
    %468 = vmatprep.subr.mxu0 0.0
    %469 = vmatpush2.msra.mxu0 0.0
    %470 = vmatprep.subr.mxu0 0.0
    %471 = vmatpush2.msra.mxu0 0.0
    %472 = vmatprep.subr.mxu0 0.0
    %473 = vmatpush2.msra.mxu0 0.0
    %474 = vmatprep.subr.mxu0 0.0
    %475 = vmatpush2.msra.mxu0 0.0
    %476 = vmatprep.subr.mxu0 0.0
    %477 = vmatpush2.msra.mxu0 0.0
    %478 = vmatprep.subr.mxu0 0.0
    %479 = vmatpush2.msra.mxu0 0.0
    %480 = vmatprep.subr.mxu0 0.0
    %481 = vmatpush2.msra.mxu0 0.0
    %482 = vmatprep.subr.mxu0 0.0
    %483 = vmatpush2.msra.mxu0 0.0
    %484 = vmatprep.subr.mxu0 0.0
    %485 = vmatpush2.msra.mxu0 0.0
    %486 = vmatprep.subr.mxu0 0.0
    %487 = vmatpush2.msra.mxu0 0.0
    %488 = vmatprep.mubr.f32.mxu0 0.0
    %489 = vmatmul.mubr.f32.gmra.mxu0 %v422
    %v490 = vpop.f32.mrf.mxu0
    %v491 = vadd.f32 %v419, %v490
    %v492 = vpop.f32.mrf.mxu0
    %493 = vdwg.mxu0
    %vm494 = vcmask 254976
    %495 = vst.msk [vmem:[%s11] sm:$0x3] %vm494, %v491
    // Predicated region
    $region106: #{mlp_noise_forward.1} parent=1 // pred_check
      _
    $region107: #{mlp_noise_forward.1} parent=1 // pred_check_branch
      %497 = sbr.rel (0) target = $region109
    $region108: #{mlp_noise_forward.1} parent=1 // pred_region
      _
    $region109: #{mlp_noise_forward.1} parent=1 // pred_fallthru
      _
    // Predicated region
    $region110: #{mlp_noise_forward.1} parent=1 // pred_check
      _
    $region111: #{mlp_noise_forward.1} parent=1 // pred_check_branch
      %499 = sbr.rel (0) target = $region113
    $region112: #{mlp_noise_forward.1} parent=1 // pred_region
      _
    $region113: #{mlp_noise_forward.1} parent=1 // pred_fallthru
      _
    %500 = vsyncpa [#allocation5], 1
  %501 = vsyncmov [#allocation3]
  %s502 = vpop.sfrf %501
  %p503 = scmp.eq.s32.totalorder %s502, 0
  %p504 = pneg %p503
  %506 = shalt.err (%p504)
  %s507 = scalar_lea.sflag [#allocation3], 1
  %508 = vsyncmov %s507
  %s509 = vpop.sfrf %508
  %p510 = scmp.eq.s32.totalorder %s509, 0
  %p511 = pneg %p510
  %513 = shalt.err (%p511)

</llo_original>
